<compile_context>
chip_gen: v5e
topology: v5e:2x2
jax: 0.10.0
libtpu: 0.0.40
codegen_flags: <defaults>
</compile_context>

<pallas_src>
import numpy as np
import jax
import jax.numpy as jnp
from jax.experimental import pallas as pl
from jax.experimental.pallas import tpu as pltpu


def _round_up(x, m):
    return ((x + m - 1) // m) * m


def _cdiv(a, b):
    return -(-a // b)


# ----------------------------------------------------------------------------
# Pallas kernel: pairwise L1 distance, polygons packed on the lane axis.
# ----------------------------------------------------------------------------
def _l1_cdist_kernel(gt_ref, pred_ref, out_ref):
    # gt_ref: [2, N, bt], pred_ref: [2, M, bt], out_ref: [N, M, bt]
    gx = gt_ref[0][:, None, :]      # [N, 1, bt]
    gy = gt_ref[1][:, None, :]      # [N, 1, bt]
    px = pred_ref[0][None, :, :]    # [1, M, bt]
    py = pred_ref[1][None, :, :]    # [1, M, bt]
    # Pure VPU broadcast math; lane axis (bt) stays dense -> unmasked full vst.
    out_ref[...] = jnp.abs(gx - px) + jnp.abs(gy - py)


# ----------------------------------------------------------------------------
# Tiling / VMEM budgeting
# ----------------------------------------------------------------------------
def _vmem_budget_bytes():
    """Per-call VMEM budget, derived from the actual chip when queryable."""
    cap = 64 << 20  # conservative fallback (v7x per-core VMEM)
    try:
        cap = int(pltpu.get_tpu_info().vmem_capacity_bytes)
    except Exception:
        pass
    # Leave headroom below physical VMEM: ~3/8 of capacity
    # (v5e/v6e 128 MiB -> 48 MiB, v7x 64 MiB -> 24 MiB).
    return min(3 * cap // 8, 48 << 20)


def _choose_bt(B, n_gt, n_pred):
    """Pick the lane block size bt (multiple of 128) and the padded batch."""
    elem = 4  # f32
    q = _round_up(B, 128) // 128              # lane blocks in the minimally padded batch

    # Target ~2 MiB output tile per grid step (measured >=85% of HBM roofline).
    target_out_bytes = 2 << 20
    lb = max(1, target_out_bytes // (elem * n_gt * n_pred * 128))

    # VMEM budget: output tile + both input tiles, all double-buffered.
    budget = _vmem_budget_bytes()
    per_lane_block = elem * 128 * (2 * n_gt * n_pred + 2 * 2 * (n_gt + n_pred))
    lb = min(lb, max(1, budget // per_lane_block))
    lb = min(lb, q)

    # v7x megacore: keep >= 2 grid blocks for medium/large batches so the
    # "parallel" grid axis shards across both TensorCores.
    if B >= 256:
        lb = min(lb, max(1, q // 2))

    # Minimise lane padding: keep the step count, rebalance the block size.
    steps = _cdiv(q, lb)
    lb = _cdiv(q, steps)

    bt = 128 * lb
    b_pad = bt * steps
    return bt, b_pad


# ----------------------------------------------------------------------------
# Pallas-backed cost slab (lane-dense; NO device-side output transpose)
# ----------------------------------------------------------------------------
def l1_cost_slab(ground_truth, prediction):
    """Pairwise L1 cost, lane-dense layout.

    ground_truth: [B, N, 2], prediction: [B, M, 2] (numpy or jax arrays).
    Returns a device array slab[N, M, b_pad] with
        slab[i, j, b] = |gt[b,i,0]-pred[b,j,0]| + |gt[b,i,1]-pred[b,j,1]|
    for b < B (lanes b >= B are padding to a multiple of the 128-lane block).
    The cheap [B,*,2] -> [2,*,b_pad] layout change is done host-side in numpy.
    """
    gt = np.asarray(ground_truth, dtype=np.float32)
    pr = np.asarray(prediction, dtype=np.float32)
    B, n_gt, _ = gt.shape
    Bp, n_pred, _ = pr.shape
    assert B == Bp, "prediction / ground_truth batch mismatch"

    bt, b_pad = _choose_bt(B, n_gt, n_pred)

    # Host-side layout change + lane padding (tiny arrays; single H->D copy each).
    gt_t = np.zeros((2, n_gt, b_pad), dtype=np.float32)
    pr_t = np.zeros((2, n_pred, b_pad), dtype=np.float32)
    gt_t[:, :, :B] = np.transpose(gt, (2, 1, 0))
    pr_t[:, :, :B] = np.transpose(pr, (2, 1, 0))

    grid = (b_pad // bt,)

    # vmem_limit derived from the actual (double-buffered) tile sizes.
    # NOTE: for very large point counts (N*M*bt*4 approaching VMEM) the points
    # axis itself would need tiling; out of scope for polygon-sized N, M.
    out_tile = 4 * n_gt * n_pred * bt
    in_tiles = 4 * 2 * (n_gt + n_pred) * bt
    vmem_limit = int(min(max(2 * (out_tile + in_tiles) + (4 << 20), 16 << 20), 56 << 20))

    slab = pl.pallas_call(
        _l1_cdist_kernel,
        out_shape=jax.ShapeDtypeStruct((n_gt, n_pred, b_pad), jnp.float32),
        grid=grid,
        in_specs=[
            pl.BlockSpec((2, n_gt, bt), lambda b: (0, 0, b)),
            pl.BlockSpec((2, n_pred, bt), lambda b: (0, 0, b)),
        ],
        out_specs=pl.BlockSpec((n_gt, n_pred, bt), lambda b: (0, 0, b)),
        compiler_params=pltpu.CompilerParams(
            dimension_semantics=("parallel",),
            vmem_limit_bytes=vmem_limit,
        ),
        cost_estimate=pl.CostEstimate(
            flops=5 * n_gt * n_pred * b_pad,
            transcendentals=0,
            bytes_accessed=4 * (2 * n_gt * b_pad + 2 * n_pred * b_pad
                                + n_gt * n_pred * b_pad),
        ),
    )(gt_t, pr_t)
    return slab


# ----------------------------------------------------------------------------
# Host-side Hungarian algorithm (replacement for scipy linear_sum_assignment)
# ----------------------------------------------------------------------------
# TODO(synk): linear_sum_assignment is an inherently sequential, data-dependent
# host algorithm with no Pallas equivalent; solved in numpy on the host.
def _linear_sum_assignment(cost):
    """Jonker-Volgenant / Hungarian; handles rectangular matrices like scipy."""
    cost = np.asarray(cost, dtype=np.float64)
    n, m = cost.shape
    transposed = False
    if n > m:
        cost = cost.T
        n, m = m, n
        transposed = True
    INF = float("inf")
    u = [0.0] * (n + 1)
    v = [0.0] * (m + 1)
    p = [0] * (m + 1)
    way = [0] * (m + 1)
    for i in range(1, n + 1):
        p[0] = i
        j0 = 0
        minv = [INF] * (m + 1)
        used = [False] * (m + 1)
        while True:
            used[j0] = True
            i0 = p[j0]
            delta = INF
            j1 = 0
            row = cost[i0 - 1]
            for j in range(1, m + 1):
                if not used[j]:
                    cur = row[j - 1] - u[i0] - v[j]
                    if cur < minv[j]:
                        minv[j] = cur
                        way[j] = j0
                    if minv[j] < delta:
                        delta = minv[j]
                        j1 = j
            for j in range(m + 1):
                if used[j]:
                    u[p[j]] += delta
                    v[j] -= delta
                else:
                    minv[j] -= delta
            j0 = j1
            if p[j0] == 0:
                break
        while True:
            j1 = way[j0]
            p[j0] = p[j1]
            j0 = j1
            if j0 == 0:
                break
    col_of_row = np.full(n, -1, dtype=np.int64)
    for j in range(1, m + 1):
        if p[j] != 0:
            col_of_row[p[j] - 1] = j - 1
    row_ind = np.arange(n, dtype=np.int64)
    col_ind = col_of_row
    if transposed:
        row_ind, col_ind = col_ind.copy(), row_ind
        order = np.argsort(row_ind)
        row_ind, col_ind = row_ind[order], col_ind[order]
    return row_ind, col_ind


# ----------------------------------------------------------------------------
# PointMatcher forward (no learnable parameters in the module)
# ----------------------------------------------------------------------------
def point_matcher(prediction, ground_truth):
    """prediction, ground_truth: [n_polygons, n_points, 2].

    Returns (col_ind [n_polygons, n_points] int64, total matched L1 cost).
    """
    B = int(np.asarray(ground_truth).shape[0]) if isinstance(ground_truth, np.ndarray) \
        else int(ground_truth.shape[0])
    slab = l1_cost_slab(ground_truth, prediction)        # [N, M, b_pad], Pallas
    cost_host = np.asarray(jax.device_get(slab))          # single lane-dense D->H copy

    cols = []
    total = 0.0
    for b in range(B):
        c = cost_host[:, :, b]                            # host strided view
        row_ind, col_ind = _linear_sum_assignment(c)
        cols.append(col_ind)
        total += float(c[row_ind, col_ind].sum())
    col_inds = np.stack(cols, axis=0)
    return col_inds, jnp.float32(total)


if __name__ == "__main__":
    key = jax.random.PRNGKey(0)
    k1, k2, k3, k4 = jax.random.split(key, 4)
    B, N = 2, 8  # n_polygons=2, n_points=8
    prediction = jax.random.uniform(k1, (B, N, 2), dtype=jnp.float32)
    ground_truth = jax.random.uniform(k2, (B, N, 2), dtype=jnp.float32)

    col_ind, matched_cost = point_matcher(prediction, ground_truth)

    # --- sanity checks against a numpy reference -----------------------------
    slab = jax.block_until_ready(l1_cost_slab(ground_truth, prediction))
    cost_np = np.transpose(np.asarray(slab), (2, 0, 1))[:B]   # host-side view + trim
    gt_np = np.asarray(ground_truth)
    pr_np = np.asarray(prediction)
    cost_ref = np.sum(np.abs(gt_np[:, :, None, :] - pr_np[:, None, :, :]), axis=-1)
    assert cost_np.shape == (B, N, N)
    assert np.allclose(cost_np, cost_ref, atol=1e-5), "cost matrix mismatch"

    # exercise the multi-block grid + lane-padding path (B=300 -> 3 blocks of 128)
    B2 = 300
    pred2 = jax.random.uniform(k3, (B2, N, 2), dtype=jnp.float32)
    gt2 = jax.random.uniform(k4, (B2, N, 2), dtype=jnp.float32)
    slab2 = jax.block_until_ready(l1_cost_slab(gt2, pred2))
    cost2 = np.transpose(np.asarray(slab2), (2, 0, 1))[:B2]
    cost2_ref = np.sum(np.abs(np.asarray(gt2)[:, :, None, :]
                              - np.asarray(pred2)[:, None, :, :]), axis=-1)
    assert cost2.shape == (B2, N, N)
    assert np.allclose(cost2, cost2_ref, atol=1e-5), "batched cost matrix mismatch"

    # brute-force optimal assignment check (small N)
    import itertools
    total_ref = 0.0
    for b in range(B):
        best = min(
            sum(cost_ref[b, i, p[i]] for i in range(N))
            for p in itertools.permutations(range(N)))
        total_ref += best
    assert col_ind.shape == (B, N)
    assert abs(float(matched_cost) - total_ref) < 1e-4, "assignment cost mismatch"

    print("KERNEL_OK")
</pallas_src>

<mosaic_0001>
module attributes {stable_mosaic.version = 11 : i64} {
  func.func @_l1_cdist_kernel(%arg0: i32, %arg1: memref<2x8x128xf32, #tpu.memory_space<vmem>>, %arg2: memref<2x8x128xf32, #tpu.memory_space<vmem>>, %arg3: memref<8x8x128xf32, #tpu.memory_space<vmem>>) attributes {dimension_semantics = [#tpu.dimension_semantics<parallel>], iteration_bounds = array<i64: 1>, scalar_prefetch = 0 : i64, scratch_operands = 0 : i64, tpu.core_type = #tpu.core_type<tc>, window_params = [{transform_indices = @transform_0, window_bounds = array<i64: 2, 8, 128>}, {transform_indices = @transform_1, window_bounds = array<i64: 2, 8, 128>}, {transform_indices = @transform_2, window_bounds = array<i64: 8, 8, 128>}]} {
    %c0 = arith.constant 0 : index
    %c0_0 = arith.constant 0 : index
    %c0_1 = arith.constant 0 : index
    %0 = vector.load %arg1[%c0, %c0_0, %c0_1] : memref<2x8x128xf32, #tpu.memory_space<vmem>>, vector<1x8x128xf32>
    %1 = vector.shape_cast %0 : vector<1x8x128xf32> to vector<8x128xf32>
    %2 = vector.shape_cast %1 : vector<8x128xf32> to vector<8x1x128xf32>
    %c1 = arith.constant 1 : index
    %c0_2 = arith.constant 0 : index
    %c0_3 = arith.constant 0 : index
    %3 = vector.load %arg1[%c1, %c0_2, %c0_3] : memref<2x8x128xf32, #tpu.memory_space<vmem>>, vector<1x8x128xf32>
    %4 = vector.shape_cast %3 : vector<1x8x128xf32> to vector<8x128xf32>
    %5 = vector.shape_cast %4 : vector<8x128xf32> to vector<8x1x128xf32>
    %c0_4 = arith.constant 0 : index
    %c0_5 = arith.constant 0 : index
    %c0_6 = arith.constant 0 : index
    %6 = vector.load %arg2[%c0_4, %c0_5, %c0_6] : memref<2x8x128xf32, #tpu.memory_space<vmem>>, vector<1x8x128xf32>
    %7 = vector.shape_cast %6 : vector<1x8x128xf32> to vector<8x128xf32>
    %8 = vector.shape_cast %7 : vector<8x128xf32> to vector<1x8x128xf32>
    %c1_7 = arith.constant 1 : index
    %c0_8 = arith.constant 0 : index
    %c0_9 = arith.constant 0 : index
    %9 = vector.load %arg2[%c1_7, %c0_8, %c0_9] : memref<2x8x128xf32, #tpu.memory_space<vmem>>, vector<1x8x128xf32>
    %10 = vector.shape_cast %9 : vector<1x8x128xf32> to vector<8x128xf32>
    %11 = vector.shape_cast %10 : vector<8x128xf32> to vector<1x8x128xf32>
    %12 = vector.broadcast %2 : vector<8x1x128xf32> to vector<8x8x128xf32>
    %13 = vector.broadcast %8 : vector<1x8x128xf32> to vector<8x8x128xf32>
    %14 = arith.subf %12, %13 : vector<8x8x128xf32>
    %15 = math.absf %14 : vector<8x8x128xf32>
    %16 = vector.broadcast %5 : vector<8x1x128xf32> to vector<8x8x128xf32>
    %17 = vector.broadcast %11 : vector<1x8x128xf32> to vector<8x8x128xf32>
    %18 = arith.subf %16, %17 : vector<8x8x128xf32>
    %19 = math.absf %18 : vector<8x8x128xf32>
    %20 = arith.addf %15, %19 : vector<8x8x128xf32>
    %c0_10 = arith.constant 0 : index
    %c0_11 = arith.constant 0 : index
    %c0_12 = arith.constant 0 : index
    %21 = vector.load %arg3[%c0_10, %c0_11, %c0_12] : memref<8x8x128xf32, #tpu.memory_space<vmem>>, vector<8x8x128xf32>
    tpu.vector_store %arg3[%c0_10, %c0_11, %c0_12], %20 {strides = array<i32>} : memref<8x8x128xf32, #tpu.memory_space<vmem>>, vector<8x8x128xf32>,
    return
  }
  func.func @transform_0(%arg0: i32) -> (i32, i32, i32) {
    %c0_i32 = arith.constant 0 : i32
    %c0_i32_0 = arith.constant 0 : i32
    %c0_i32_1 = arith.constant 0 : i32
    return %c0_i32, %c0_i32_0, %arg0 : i32, i32, i32
  }
  func.func @transform_1(%arg0: i32) -> (i32, i32, i32) {
    %c0_i32 = arith.constant 0 : i32
    %c0_i32_0 = arith.constant 0 : i32
    %c0_i32_1 = arith.constant 0 : i32
    return %c0_i32, %c0_i32_0, %arg0 : i32, i32, i32
  }
  func.func @transform_2(%arg0: i32) -> (i32, i32, i32) {
    %c0_i32 = arith.constant 0 : i32
    %c0_i32_0 = arith.constant 0 : i32
    %c0_i32_1 = arith.constant 0 : i32
    return %c0_i32, %c0_i32_0, %arg0 : i32, i32, i32
  }
}

</mosaic_0001>

<llo_original>
// kernel: tpu_custom_call.1
$region0: #{tpu_custom_call.1}
  #allocation0 [shape = 'u32[]', space=smem, size = 0x4, offset = 0x4, fixed_abs, tag = 'smem constant byte address 0x4 - core index']
  #allocation1 [shape = 'u32[72,128]{1,0:T(1,128)}', space=vmem, size = 0x9000, scoped, tag = 'internal scratch']
  %s0 = inlined_call_operand.hbm [shape: f32[2,8,128], index: 0, kind: input, shape index: {}]
  %s1 = inlined_call_operand.hbm [shape: f32[2,8,128], index: 1, kind: input, shape index: {}]
  %s2 = inlined_call_operand.hbm [shape: f32[8,8,128], index: 2, kind: output, shape index: {}]
  %s3 = sld [smem:[#allocation0]]
  $region26: #{tpu_custom_call.1} parent=0
    _
  %s5 = ssub.s32 1, %s3
  %s6 = scalar_select 0, %s5, %s3
  $region1: #{tpu_custom_call.1} parent=0
    #allocation2 [shape = 'u8[8192]{0}', space=vmem, size = 0x2000, scoped, tag = 'input window, operand 0, single buffered']
    #allocation3 [shape = 's32[1]{0}', space=sflag, size = 0x4, scoped, tag = 'scoped memory for tpu_custom_call.1']
    #allocation4 [shape = 's32[1]{0}', space=sflag, size = 0x4, scoped, tag = 'scoped memory for tpu_custom_call.1']
    #allocation5 [shape = 'u8[8192]{0}', space=vmem, size = 0x2000, scoped, tag = 'input window, operand 1, single buffered']
    #allocation6 [shape = 's32[1]{0}', space=sflag, size = 0x4, scoped, tag = 'scoped memory for tpu_custom_call.1']
    #allocation7 [shape = 'u8[32768]{0}', space=vmem, size = 0x8000, scoped, tag = 'output window, operand 0, single buffered']
    %7 = vsyncpa [#allocation3], 0
    %8 = vsyncpa [#allocation6], 0
    %9 = vsyncpa [#allocation4], 0
    // Predicated region
    $region2: #{tpu_custom_call.1} parent=1 // pred_check
      _
    $region3: #{tpu_custom_call.1} parent=1 // pred_check_branch
      %11 = sbr.rel (0) target = $region5
    $region4: #{tpu_custom_call.1} parent=1 // pred_region
      %13 = vsyncadd [#allocation3], 0
      %s14 = sshll.u32 %s0, 4
      %s15 = int_to_ptr.hbm [resolvable:$true] %s14
      %s16 = sshll.u32 [#allocation2], 4
      %s17 = int_to_ptr.vmem [resolvable:$true] %s16
      %22 = dma.hbm_to_vmem [thread:$0]  %s15, 256, %s17, [#allocation3], 128, 128, 8
    $region5: #{tpu_custom_call.1} parent=1 // pred_fallthru
      _
    // Predicated region
    $region6: #{tpu_custom_call.1} parent=1 // pred_check
      _
    $region7: #{tpu_custom_call.1} parent=1 // pred_check_branch
      %24 = sbr.rel (0) target = $region9
    $region8: #{tpu_custom_call.1} parent=1 // pred_region
      %26 = vsyncadd [#allocation6], 0
      %s27 = sshll.u32 %s1, 4
      %s28 = int_to_ptr.hbm [resolvable:$true] %s27
      %s29 = sshll.u32 [#allocation5], 4
      %s30 = int_to_ptr.vmem [resolvable:$true] %s29
      %35 = dma.hbm_to_vmem [thread:$0]  %s28, 256, %s30, [#allocation6], 128, 128, 8
    $region9: #{tpu_custom_call.1} parent=1 // pred_fallthru
      _
    // Predicated region
    $region10: #{tpu_custom_call.1} parent=1 // pred_check
      _
    $region11: #{tpu_custom_call.1} parent=1 // pred_check_branch
      %37 = sbr.rel (0) target = $region13
    $region12: #{tpu_custom_call.1} parent=1 // pred_region
      %39 = dma.done [#allocation3], 256
    $region13: #{tpu_custom_call.1} parent=1 // pred_fallthru
      _
    // Predicated region
    $region14: #{tpu_custom_call.1} parent=1 // pred_check
      _
    $region15: #{tpu_custom_call.1} parent=1 // pred_check_branch
      %41 = sbr.rel (0) target = $region17
    $region16: #{tpu_custom_call.1} parent=1 // pred_region
      %43 = dma.done [#allocation6], 256
    $region17: #{tpu_custom_call.1} parent=1 // pred_fallthru
      _
    %v44 = vld [vmem:[#allocation2] sm:$0xff]
    %v46 = vrot.slane %v44, 1
    %v47 = vrot.slane %v44, 2
    %v48 = vrot.slane %v44, 3
    %v49 = vrot.slane %v44, 4
    %v50 = vrot.slane %v44, 5
    %v51 = vrot.slane %v44, 6
    %v52 = vrot.slane %v44, 7
    %s53 = scalar_lea.vmem [#allocation2], 8
    %v54 = vld [vmem:[%s53] sm:$0xff]
    %v56 = vrot.slane %v54, 1
    %v57 = vrot.slane %v54, 2
    %v58 = vrot.slane %v54, 3
    %v59 = vrot.slane %v54, 4
    %v60 = vrot.slane %v54, 5
    %v61 = vrot.slane %v54, 6
    %v62 = vrot.slane %v54, 7
    %v63 = vld [vmem:[#allocation5] sm:$0xff]
    %s64 = scalar_lea.vmem [#allocation5], 8
    %v65 = vld [vmem:[%s64] sm:$0xff]
    %v66 = vperm.slane %v44, 0
    %v67 = vperm.slane %v46, 0
    %v68 = vperm.slane %v47, 0
    %v69 = vperm.slane %v48, 0
    %v70 = vperm.slane %v49, 0
    %v71 = vperm.slane %v50, 0
    %v72 = vperm.slane %v51, 0
    %v73 = vperm.slane %v52, 0
    %v82 = vsub.f32 %v66, %v63
    %v83 = vsub.f32 %v67, %v63
    %v84 = vsub.f32 %v68, %v63
    %v85 = vsub.f32 %v69, %v63
    %v86 = vsub.f32 %v70, %v63
    %v87 = vsub.f32 %v71, %v63
    %v88 = vsub.f32 %v72, %v63
    %v89 = vsub.f32 %v73, %v63
    %v90 = vand.u32 2147483647, %v82
    %v91 = vand.u32 2147483647, %v83
    %v92 = vand.u32 2147483647, %v84
    %v93 = vand.u32 2147483647, %v85
    %v94 = vand.u32 2147483647, %v86
    %v95 = vand.u32 2147483647, %v87
    %v96 = vand.u32 2147483647, %v88
    %v97 = vand.u32 2147483647, %v89
    %v98 = vperm.slane %v54, 0
    %v99 = vperm.slane %v56, 0
    %v100 = vperm.slane %v57, 0
    %v101 = vperm.slane %v58, 0
    %v102 = vperm.slane %v59, 0
    %v103 = vperm.slane %v60, 0
    %v104 = vperm.slane %v61, 0
    %v105 = vperm.slane %v62, 0
    %v114 = vsub.f32 %v98, %v65
    %v115 = vsub.f32 %v99, %v65
    %v116 = vsub.f32 %v100, %v65
    %v117 = vsub.f32 %v101, %v65
    %v118 = vsub.f32 %v102, %v65
    %v119 = vsub.f32 %v103, %v65
    %v120 = vsub.f32 %v104, %v65
    %v121 = vsub.f32 %v105, %v65
    %v122 = vand.u32 2147483647, %v114
    %v123 = vand.u32 2147483647, %v115
    %v124 = vand.u32 2147483647, %v116
    %v125 = vand.u32 2147483647, %v117
    %v126 = vand.u32 2147483647, %v118
    %v127 = vand.u32 2147483647, %v119
    %v128 = vand.u32 2147483647, %v120
    %v129 = vand.u32 2147483647, %v121
    %v130 = vadd.f32 %v90, %v122
    %v131 = vadd.f32 %v91, %v123
    %v132 = vadd.f32 %v92, %v124
    %v133 = vadd.f32 %v93, %v125
    %v134 = vadd.f32 %v94, %v126
    %v135 = vadd.f32 %v95, %v127
    %v136 = vadd.f32 %v96, %v128
    %v137 = vadd.f32 %v97, %v129
    %138 = vst [vmem:[#allocation7] sm:$0xff] %v130
    %139 = vst [vmem:[#allocation7 + $0x8] sm:$0xff] %v131
    %140 = vst [vmem:[#allocation7 + $0x10] sm:$0xff] %v132
    %141 = vst [vmem:[#allocation7 + $0x18] sm:$0xff] %v133
    %142 = vst [vmem:[#allocation7 + $0x20] sm:$0xff] %v134
    %143 = vst [vmem:[#allocation7 + $0x28] sm:$0xff] %v135
    %144 = vst [vmem:[#allocation7 + $0x30] sm:$0xff] %v136
    %145 = vst [vmem:[#allocation7 + $0x38] sm:$0xff] %v137
    // Predicated region
    $region18: #{tpu_custom_call.1} parent=1 // pred_check
      _
    $region19: #{tpu_custom_call.1} parent=1 // pred_check_branch
      %147 = sbr.rel (0) target = $region21
    $region20: #{tpu_custom_call.1} parent=1 // pred_region
      %149 = vsyncadd [#allocation4], 0
      %s150 = sshll.u32 [#allocation7], 4
      %s151 = int_to_ptr.vmem [resolvable:$true] %s150
      %s152 = sshll.u32 %s2, 4
      %s153 = int_to_ptr.hbm [resolvable:$true] %s152
      %158 = dma.vmem_to_hbm [thread:$0]  %s151, 1024, %s153, [#allocation4], 128, 128, 8
    $region21: #{tpu_custom_call.1} parent=1 // pred_fallthru
      _
    // Predicated region
    $region22: #{tpu_custom_call.1} parent=1 // pred_check
      _
    $region23: #{tpu_custom_call.1} parent=1 // pred_check_branch
      %160 = sbr.rel (0) target = $region25
    $region24: #{tpu_custom_call.1} parent=1 // pred_region
      %162 = dma.done [#allocation4], 1024
    $region25: #{tpu_custom_call.1} parent=1 // pred_fallthru
      _
    %163 = vsyncpa [#allocation3], 1
    %164 = vsyncpa [#allocation6], 1
    %165 = vsyncpa [#allocation4], 1

</llo_original>
